<compile_context>
chip_gen: v7x
topology: tpu7x:2x2x1
jax: 0.10.0
libtpu: 0.0.40
codegen_flags: <defaults>
</compile_context>

<pallas_src>
import functools

import jax
import jax.numpy as jnp
from jax.experimental import pallas as pl
from jax.experimental.pallas import tpu as pltpu

LOG_STD_MIN, LOG_STD_MAX = -20.0, 2.0
HIDDEN = 256
OUT_LANES = 128  # lane-dense output slab width (>= action_dim + 1)


def _round_up(x, m):
    return ((x + m - 1) // m) * m


def actor_kernel(obs_ref, w1_ref, b1_ref, w2_ref, b2_ref, w3_ref, b3_ref,
                 eps_ref, out_ref, *, action_dim):
    A = action_dim

    # --- MLP: state_dim -> 256 -> 256 -> 2*A (fused mean|log_std head) ---
    # bf16 inputs on the MXU, f32 accumulation, f32 elementwise everywhere.
    h = obs_ref[...].astype(jnp.bfloat16)
    h = jnp.maximum(
        jnp.dot(h, w1_ref[...], preferred_element_type=jnp.float32) + b1_ref[...],
        0.0)
    h = jnp.maximum(
        jnp.dot(h.astype(jnp.bfloat16), w2_ref[...],
                preferred_element_type=jnp.float32) + b2_ref[...],
        0.0)
    head = (jnp.dot(h.astype(jnp.bfloat16), w3_ref[...],
                    preferred_element_type=jnp.float32) + b3_ref[...])

    mean = head[:, :A]
    log_std = jnp.clip(head[:, A:], LOG_STD_MIN, LOG_STD_MAX)
    std = jnp.exp(log_std)

    # --- TanhNormal rsample + log_prob ---
    eps = eps_ref[...]
    pre_tanh = mean + std * eps
    action = jnp.tanh(pre_tanh)

    # Normal(mean, std).log_prob(pre_tanh): z = (pre_tanh - mean)/std == eps.
    normal_lp = -0.5 * eps * eps - log_std - 0.5 * jnp.log(2.0 * jnp.pi)

    # tanh log-det-Jacobian: 2*log2 + logsigmoid(2x) + logsigmoid(-2x)
    #                      = 2*(log2 - |x| - softplus(-2|x|))   (one exp+log1p)
    abs_pre = jnp.abs(pre_tanh)
    log_det = 2.0 * (jnp.log(2.0) - abs_pre - jnp.log1p(jnp.exp(-2.0 * abs_pre)))

    lp = normal_lp - log_det
    log_prob = jnp.sum(lp, axis=1, keepdims=True)   # only the A real lanes

    # Lane-dense output slab: [action | log_prob | zeros].
    bm = out_ref.shape[0]
    pad = jnp.zeros((bm, out_ref.shape[1] - A - 1), jnp.float32)
    out_ref[...] = jnp.concatenate([action, log_prob, pad], axis=1)


def actor_forward(obs, params, eps, *, block_m=256):
    """Actor forward (training mode). Returns (action (B,A), log_prob (B,1))."""
    B, state_dim = obs.shape
    A = eps.shape[1]
    w1, b1, w2, b2, w3, b3 = params

    out_w = max(OUT_LANES, _round_up(A + 1, 128))

    # Batch tiling: sublane-aligned tiles; weights stay resident across tiles.
    bm = block_m if B >= block_m else _round_up(B, 8)
    b_pad = _round_up(B, bm)
    if b_pad != B:
        obs = jnp.pad(obs, ((0, b_pad - B), (0, 0)))
        eps = jnp.pad(eps, ((0, b_pad - B), (0, 0)))
    grid = (b_pad // bm,)

    const = lambda i: (0, 0)          # weight/bias blocks: fetched once, resident
    batched = lambda i: (i, 0)        # per-batch-tile blocks

    out = pl.pallas_call(
        functools.partial(actor_kernel, action_dim=A),
        out_shape=jax.ShapeDtypeStruct((b_pad, out_w), jnp.float32),
        grid_spec=pltpu.PrefetchScalarGridSpec(
            num_scalar_prefetch=0,
            grid=grid,
            in_specs=[
                pl.BlockSpec((bm, state_dim), batched),      # obs tile
                pl.BlockSpec((state_dim, HIDDEN), const),    # w1 (bf16)
                pl.BlockSpec((1, HIDDEN), const),            # b1
                pl.BlockSpec((HIDDEN, HIDDEN), const),       # w2 (bf16)
                pl.BlockSpec((1, HIDDEN), const),            # b2
                pl.BlockSpec((HIDDEN, 2 * A), const),        # w3 fused head (bf16)
                pl.BlockSpec((1, 2 * A), const),             # b3
                pl.BlockSpec((bm, A), batched),              # eps tile
            ],
            out_specs=pl.BlockSpec((bm, out_w), batched),
        ),
        compiler_params=pltpu.CompilerParams(
            dimension_semantics=("parallel",),               # v7x: 2 TCs share batch
            vmem_limit_bytes=48 * 1024 * 1024,               # safe on v7x's 64 MiB
        ),
    )(obs, w1, b1, w2, b2, w3, b3, eps)

    action = out[:B, :A]
    log_prob = out[:B, A:A + 1]
    return action, log_prob


def init_params(key, state_dim, action_dim):
    """PyTorch-Linear-style init U(-1/sqrt(fan_in), 1/sqrt(fan_in)).
    Weights cast to bf16 (MXU inputs / half the HBM traffic), biases stay f32."""
    def linear(key, fan_in, fan_out):
        kw, kb = jax.random.split(key)
        bound = 1.0 / jnp.sqrt(jnp.float32(fan_in))
        w = jax.random.uniform(kw, (fan_in, fan_out), jnp.float32, -bound, bound)
        b = jax.random.uniform(kb, (1, fan_out), jnp.float32, -bound, bound)
        return w.astype(jnp.bfloat16), b

    k1, k2, k3 = jax.random.split(key, 3)
    w1, b1 = linear(k1, state_dim, HIDDEN)
    w2, b2 = linear(k2, HIDDEN, HIDDEN)
    w3, b3 = linear(k3, HIDDEN, 2 * action_dim)   # fused (mean | log_std) head
    return (w1, b1, w2, b2, w3, b3)


if __name__ == "__main__":
    B, STATE_DIM, ACTION_DIM = 2, 16, 6

    root = jax.random.PRNGKey(0)
    k_params, k_obs, k_eps = jax.random.split(root, 3)

    params = init_params(k_params, STATE_DIM, ACTION_DIM)
    obs = jax.random.normal(k_obs, (B, STATE_DIM), jnp.float32)
    eps = jax.random.normal(k_eps, (B, ACTION_DIM), jnp.float32)

    action, log_prob = actor_forward(obs, params, eps)
    jax.block_until_ready((action, log_prob))

    assert action.shape == (B, ACTION_DIM)
    assert log_prob.shape == (B, 1)
    assert bool(jnp.all(jnp.isfinite(action)))
    assert bool(jnp.all(jnp.isfinite(log_prob)))
    assert bool(jnp.all(jnp.abs(action) <= 1.0))
    print("KERNEL_OK")
</pallas_src>

<mosaic_0001>
module attributes {stable_mosaic.version = 11 : i64} {
  func.func @actor_kernel(%arg0: i32, %arg1: memref<8x16xf32, #tpu.memory_space<vmem>>, %arg2: memref<16x256xbf16, #tpu.memory_space<vmem>>, %arg3: memref<1x256xf32, #tpu.memory_space<vmem>>, %arg4: memref<256x256xbf16, #tpu.memory_space<vmem>>, %arg5: memref<1x256xf32, #tpu.memory_space<vmem>>, %arg6: memref<256x12xbf16, #tpu.memory_space<vmem>>, %arg7: memref<1x12xf32, #tpu.memory_space<vmem>>, %arg8: memref<8x6xf32, #tpu.memory_space<vmem>>, %arg9: memref<8x128xf32, #tpu.memory_space<vmem>>) attributes {dimension_semantics = [#tpu.dimension_semantics<parallel>], iteration_bounds = array<i64: 1>, scalar_prefetch = 0 : i64, scratch_operands = 0 : i64, tpu.core_type = #tpu.core_type<tc>, window_params = [{transform_indices = @transform_0, window_bounds = array<i64: 8, 16>}, {pipeline_mode = #tpu.pipeline_mode<synchronous>, transform_indices = @transform_1, window_bounds = array<i64: 16, 256>}, {pipeline_mode = #tpu.pipeline_mode<synchronous>, transform_indices = @transform_2, window_bounds = array<i64: 1, 256>}, {pipeline_mode = #tpu.pipeline_mode<synchronous>, transform_indices = @transform_3, window_bounds = array<i64: 256, 256>}, {pipeline_mode = #tpu.pipeline_mode<synchronous>, transform_indices = @transform_4, window_bounds = array<i64: 1, 256>}, {pipeline_mode = #tpu.pipeline_mode<synchronous>, transform_indices = @transform_5, window_bounds = array<i64: 256, 12>}, {pipeline_mode = #tpu.pipeline_mode<synchronous>, transform_indices = @transform_6, window_bounds = array<i64: 1, 12>}, {transform_indices = @transform_7, window_bounds = array<i64: 8, 6>}, {transform_indices = @transform_8, window_bounds = array<i64: 8, 128>}]} {
    %c0 = arith.constant 0 : index
    %c0_0 = arith.constant 0 : index
    %0 = vector.load %arg1[%c0, %c0_0] : memref<8x16xf32, #tpu.memory_space<vmem>>, vector<8x16xf32>
    %1 = arith.truncf %0 : vector<8x16xf32> to vector<8x16xbf16>
    %c0_1 = arith.constant 0 : index
    %c0_2 = arith.constant 0 : index
    %2 = vector.load %arg2[%c0_1, %c0_2] : memref<16x256xbf16, #tpu.memory_space<vmem>>, vector<16x256xbf16>
    %cst = arith.constant dense<0.000000e+00> : vector<8x256xf32>
    %3 = tpu.matmul %1, %2, %cst {dimension_numbers = #tpu.dot_dimension_numbers<[1], [0], [0], [1], [0, 0, 1, 1], [], []>} : vector<8x16xbf16>, vector<16x256xbf16>, vector<8x256xf32> -> vector<8x256xf32>
    %c0_3 = arith.constant 0 : index
    %c0_4 = arith.constant 0 : index
    %4 = vector.load %arg3[%c0_3, %c0_4] : memref<1x256xf32, #tpu.memory_space<vmem>>, vector<1x256xf32>
    %5 = vector.broadcast %4 : vector<1x256xf32> to vector<8x256xf32>
    %6 = arith.addf %3, %5 : vector<8x256xf32>
    %cst_5 = arith.constant 0.000000e+00 : f32
    %7 = vector.broadcast %cst_5 : f32 to vector<8x256xf32>
    %8 = arith.maximumf %6, %7 : vector<8x256xf32>
    %9 = arith.truncf %8 : vector<8x256xf32> to vector<8x256xbf16>
    %c0_6 = arith.constant 0 : index
    %c0_7 = arith.constant 0 : index
    %10 = vector.load %arg4[%c0_6, %c0_7] : memref<256x256xbf16, #tpu.memory_space<vmem>>, vector<256x256xbf16>
    %cst_8 = arith.constant dense<0.000000e+00> : vector<8x256xf32>
    %11 = tpu.matmul %9, %10, %cst_8 {dimension_numbers = #tpu.dot_dimension_numbers<[1], [0], [0], [1], [0, 0, 1, 1], [], []>} : vector<8x256xbf16>, vector<256x256xbf16>, vector<8x256xf32> -> vector<8x256xf32>
    %c0_9 = arith.constant 0 : index
    %c0_10 = arith.constant 0 : index
    %12 = vector.load %arg5[%c0_9, %c0_10] : memref<1x256xf32, #tpu.memory_space<vmem>>, vector<1x256xf32>
    %13 = vector.broadcast %12 : vector<1x256xf32> to vector<8x256xf32>
    %14 = arith.addf %11, %13 : vector<8x256xf32>
    %cst_11 = arith.constant 0.000000e+00 : f32
    %15 = vector.broadcast %cst_11 : f32 to vector<8x256xf32>
    %16 = arith.maximumf %14, %15 : vector<8x256xf32>
    %17 = arith.truncf %16 : vector<8x256xf32> to vector<8x256xbf16>
    %c0_12 = arith.constant 0 : index
    %c0_13 = arith.constant 0 : index
    %18 = vector.load %arg6[%c0_12, %c0_13] : memref<256x12xbf16, #tpu.memory_space<vmem>>, vector<256x12xbf16>
    %cst_14 = arith.constant dense<0.000000e+00> : vector<8x12xf32>
    %19 = tpu.matmul %17, %18, %cst_14 {dimension_numbers = #tpu.dot_dimension_numbers<[1], [0], [0], [1], [0, 0, 1, 1], [], []>} : vector<8x256xbf16>, vector<256x12xbf16>, vector<8x12xf32> -> vector<8x12xf32>
    %c0_15 = arith.constant 0 : index
    %c0_16 = arith.constant 0 : index
    %20 = vector.load %arg7[%c0_15, %c0_16] : memref<1x12xf32, #tpu.memory_space<vmem>>, vector<1x12xf32>
    %21 = vector.broadcast %20 : vector<1x12xf32> to vector<8x12xf32>
    %22 = arith.addf %19, %21 : vector<8x12xf32>
    %23 = vector.extract_strided_slice %22 {offsets = [0, 0], sizes = [8, 6], strides = [1, 1]} : vector<8x12xf32> to vector<8x6xf32>
    %24 = vector.extract_strided_slice %22 {offsets = [0, 6], sizes = [8, 6], strides = [1, 1]} : vector<8x12xf32> to vector<8x6xf32>
    %cst_17 = arith.constant -2.000000e+01 : f32
    %cst_18 = arith.constant 2.000000e+00 : f32
    %25 = vector.broadcast %cst_17 : f32 to vector<8x6xf32>
    %26 = arith.maximumf %25, %24 : vector<8x6xf32>
    %27 = vector.broadcast %cst_18 : f32 to vector<8x6xf32>
    %28 = arith.minimumf %27, %26 : vector<8x6xf32>
    %29 = math.exp %28 : vector<8x6xf32>
    %c0_19 = arith.constant 0 : index
    %c0_20 = arith.constant 0 : index
    %30 = vector.load %arg8[%c0_19, %c0_20] : memref<8x6xf32, #tpu.memory_space<vmem>>, vector<8x6xf32>
    %31 = arith.mulf %29, %30 : vector<8x6xf32>
    %32 = arith.addf %23, %31 : vector<8x6xf32>
    %33 = math.tanh %32 : vector<8x6xf32>
    %cst_21 = arith.constant -5.000000e-01 : f32
    %34 = vector.broadcast %cst_21 : f32 to vector<8x6xf32>
    %35 = arith.mulf %34, %30 : vector<8x6xf32>
    %36 = arith.mulf %35, %30 : vector<8x6xf32>
    %37 = arith.subf %36, %28 : vector<8x6xf32>
    %cst_22 = arith.constant 6.28318548 : f32
    %38 = math.log %cst_22 : f32
    %cst_23 = arith.constant 5.000000e-01 : f32
    %39 = arith.mulf %cst_23, %38 : f32
    %40 = vector.broadcast %39 : f32 to vector<8x6xf32>
    %41 = arith.subf %37, %40 : vector<8x6xf32>
    %42 = math.absf %32 : vector<8x6xf32>
    %cst_24 = arith.constant 2.000000e+00 : f32
    %43 = math.log %cst_24 : f32
    %44 = vector.broadcast %43 : f32 to vector<8x6xf32>
    %45 = arith.subf %44, %42 : vector<8x6xf32>
    %cst_25 = arith.constant -2.000000e+00 : f32
    %46 = vector.broadcast %cst_25 : f32 to vector<8x6xf32>
    %47 = arith.mulf %46, %42 : vector<8x6xf32>
    %48 = math.exp %47 : vector<8x6xf32>
    %49 = math.log1p %48 : vector<8x6xf32>
    %50 = arith.subf %45, %49 : vector<8x6xf32>
    %cst_26 = arith.constant 2.000000e+00 : f32
    %51 = vector.broadcast %cst_26 : f32 to vector<8x6xf32>
    %52 = arith.mulf %51, %50 : vector<8x6xf32>
    %53 = arith.subf %41, %52 : vector<8x6xf32>
    %cst_27 = arith.constant dense<0.000000e+00> : vector<8xf32>
    %54 = vector.multi_reduction <add>, %53, %cst_27 [1] : vector<8x6xf32> to vector<8xf32>
    %55 = vector.shape_cast %54 : vector<8xf32> to vector<8x1xf32>
    %cst_28 = arith.constant 0.000000e+00 : f32
    %56 = vector.broadcast %cst_28 : f32 to vector<8x121xf32>
    %57 = tpu.concatenate %33, %55, %56 in 1 : vector<8x6xf32>, vector<8x1xf32>, vector<8x121xf32> -> vector<8x128xf32>
    %c0_29 = arith.constant 0 : index
    %c0_30 = arith.constant 0 : index
    %58 = vector.load %arg9[%c0_29, %c0_30] : memref<8x128xf32, #tpu.memory_space<vmem>>, vector<8x128xf32>
    tpu.vector_store %arg9[%c0_29, %c0_30], %57 {strides = array<i32>} : memref<8x128xf32, #tpu.memory_space<vmem>>, vector<8x128xf32>,
    return
  }
  func.func @transform_0(%arg0: i32) -> (i32, i32) {
    %c0_i32 = arith.constant 0 : i32
    %c0_i32_0 = arith.constant 0 : i32
    return %arg0, %c0_i32 : i32, i32
  }
  func.func @transform_1(%arg0: i32) -> (i32, i32) {
    %c0_i32 = arith.constant 0 : i32
    %c0_i32_0 = arith.constant 0 : i32
    %c0_i32_1 = arith.constant 0 : i32
    return %c0_i32, %c0_i32_0 : i32, i32
  }
  func.func @transform_2(%arg0: i32) -> (i32, i32) {
    %c0_i32 = arith.constant 0 : i32
    %c0_i32_0 = arith.constant 0 : i32
    %c0_i32_1 = arith.constant 0 : i32
    return %c0_i32, %c0_i32_0 : i32, i32
  }
  func.func @transform_3(%arg0: i32) -> (i32, i32) {
    %c0_i32 = arith.constant 0 : i32
    %c0_i32_0 = arith.constant 0 : i32
    %c0_i32_1 = arith.constant 0 : i32
    return %c0_i32, %c0_i32_0 : i32, i32
  }
  func.func @transform_4(%arg0: i32) -> (i32, i32) {
    %c0_i32 = arith.constant 0 : i32
    %c0_i32_0 = arith.constant 0 : i32
    %c0_i32_1 = arith.constant 0 : i32
    return %c0_i32, %c0_i32_0 : i32, i32
  }
  func.func @transform_5(%arg0: i32) -> (i32, i32) {
    %c0_i32 = arith.constant 0 : i32
    %c0_i32_0 = arith.constant 0 : i32
    %c0_i32_1 = arith.constant 0 : i32
    return %c0_i32, %c0_i32_0 : i32, i32
  }
  func.func @transform_6(%arg0: i32) -> (i32, i32) {
    %c0_i32 = arith.constant 0 : i32
    %c0_i32_0 = arith.constant 0 : i32
    %c0_i32_1 = arith.constant 0 : i32
    return %c0_i32, %c0_i32_0 : i32, i32
  }
  func.func @transform_7(%arg0: i32) -> (i32, i32) {
    %c0_i32 = arith.constant 0 : i32
    %c0_i32_0 = arith.constant 0 : i32
    return %arg0, %c0_i32 : i32, i32
  }
  func.func @transform_8(%arg0: i32) -> (i32, i32) {
    %c0_i32 = arith.constant 0 : i32
    %c0_i32_0 = arith.constant 0 : i32
    return %arg0, %c0_i32 : i32, i32
  }
}

</mosaic_0001>

<llo_original>
// kernel: tpu_custom_call.1
$region0: #{tpu_custom_call.1}
  #allocation0 [shape = 'u32[]', space=smem, size = 0x4, offset = 0x4, fixed_abs, tag = 'smem constant byte address 0x4 - core index']
  #allocation1 [shape = 'u32[144,128]{1,0:T(1,128)}', space=vmem, size = 0x12000, scoped, tag = 'internal scratch']
  %s0 = inlined_call_operand.vmem [shape: f32[8,16], index: 0, kind: input, shape index: {}]
  %s1 = inlined_call_operand.vmem [shape: bf16[16,256], index: 1, kind: input, shape index: {}]
  %s2 = inlined_call_operand.vmem [shape: f32[1,256], index: 2, kind: input, shape index: {}]
  %s3 = inlined_call_operand.hbm [shape: bf16[256,256], index: 3, kind: input, shape index: {}]
  %s4 = inlined_call_operand.vmem [shape: f32[1,256], index: 4, kind: input, shape index: {}]
  %s5 = inlined_call_operand.vmem [shape: bf16[256,12], index: 5, kind: input, shape index: {}]
  %s6 = inlined_call_operand.vmem [shape: f32[1,12], index: 6, kind: input, shape index: {}]
  %s7 = inlined_call_operand.vmem [shape: f32[8,6], index: 7, kind: input, shape index: {}]
  %s8 = inlined_call_operand.hbm [shape: f32[8,128], index: 8, kind: output, shape index: {}]
  %s9 = sld [smem:[#allocation0]]
  $region46: #{tpu_custom_call.1} parent=0
    _
  %s11 = ssub.s32 1, %s9
  %s12 = scalar_select 0, %s11, %s9
  $region1: #{tpu_custom_call.1} parent=0
    #allocation2 [shape = 'u8[131072]{0}', space=vmem, size = 0x20000, scoped, tag = 'input window, operand 3, single buffered']
    #allocation3 [shape = 's32[1]{0}', space=sflag, size = 0x4, scoped, tag = 'scoped memory for tpu_custom_call.1']
    #allocation4 [shape = 's32[1]{0}', space=sflag, size = 0x4, scoped, tag = 'scoped memory for tpu_custom_call.1']
    #allocation5 [shape = 'u8[4096]{0}', space=vmem, size = 0x1000, scoped, tag = 'output window, operand 0, single buffered']
    %13 = vsyncpa [#allocation3], 0
    %14 = vsyncpa [#allocation4], 0
    // Predicated region
    $region2: #{tpu_custom_call.1} parent=1 // pred_check
      _
    $region3: #{tpu_custom_call.1} parent=1 // pred_check_branch
      %16 = sbr.rel (0) target = $region5
    $region4: #{tpu_custom_call.1} parent=1 // pred_region
      _
    $region5: #{tpu_custom_call.1} parent=1 // pred_fallthru
      _
    // Predicated region
    $region6: #{tpu_custom_call.1} parent=1 // pred_check
      _
    $region7: #{tpu_custom_call.1} parent=1 // pred_check_branch
      %18 = sbr.rel (0) target = $region9
    $region8: #{tpu_custom_call.1} parent=1 // pred_region
      _
    $region9: #{tpu_custom_call.1} parent=1 // pred_fallthru
      _
    // Predicated region
    $region10: #{tpu_custom_call.1} parent=1 // pred_check
      _
    $region11: #{tpu_custom_call.1} parent=1 // pred_check_branch
      %20 = sbr.rel (0) target = $region13
    $region12: #{tpu_custom_call.1} parent=1 // pred_region
      _
    $region13: #{tpu_custom_call.1} parent=1 // pred_fallthru
      _
    // Predicated region
    $region14: #{tpu_custom_call.1} parent=1 // pred_check
      _
    $region15: #{tpu_custom_call.1} parent=1 // pred_check_branch
      %22 = sbr.rel (0) target = $region17
    $region16: #{tpu_custom_call.1} parent=1 // pred_region
      %s24 = ssub.s32 4096, 4096
      %25 = vsyncadd [#allocation3], %s24
      %s26 = sshll.u32 [#allocation2], 4
      %s27 = int_to_ptr.vmem [resolvable:$true] %s26
      %32 = dma.hbm_to_vmem [thread:$0]  %s3, 4096, %s27, [#allocation3], 128, 128, 8
    $region17: #{tpu_custom_call.1} parent=1 // pred_fallthru
      _
    // Predicated region
    $region18: #{tpu_custom_call.1} parent=1 // pred_check
      _
    $region19: #{tpu_custom_call.1} parent=1 // pred_check_branch
      %34 = sbr.rel (0) target = $region21
    $region20: #{tpu_custom_call.1} parent=1 // pred_region
      _
    $region21: #{tpu_custom_call.1} parent=1 // pred_fallthru
      _
    // Predicated region
    $region22: #{tpu_custom_call.1} parent=1 // pred_check
      _
    $region23: #{tpu_custom_call.1} parent=1 // pred_check_branch
      %36 = sbr.rel (0) target = $region25
    $region24: #{tpu_custom_call.1} parent=1 // pred_region
      _
    $region25: #{tpu_custom_call.1} parent=1 // pred_fallthru
      _
    // Predicated region
    $region26: #{tpu_custom_call.1} parent=1 // pred_check
      _
    $region27: #{tpu_custom_call.1} parent=1 // pred_check_branch
      %38 = sbr.rel (0) target = $region29
    $region28: #{tpu_custom_call.1} parent=1 // pred_region
      _
    $region29: #{tpu_custom_call.1} parent=1 // pred_fallthru
      _
    // Predicated region
    $region30: #{tpu_custom_call.1} parent=1 // pred_check
      _
    $region31: #{tpu_custom_call.1} parent=1 // pred_check_branch
      %40 = sbr.rel (0) target = $region33
    $region32: #{tpu_custom_call.1} parent=1 // pred_region
      _
    $region33: #{tpu_custom_call.1} parent=1 // pred_fallthru
      _
    // Predicated region
    $region34: #{tpu_custom_call.1} parent=1 // pred_check
      _
    $region35: #{tpu_custom_call.1} parent=1 // pred_check_branch
      %42 = sbr.rel (0) target = $region37
    $region36: #{tpu_custom_call.1} parent=1 // pred_region
      %43 = dma.done [#allocation3], 4096
    $region37: #{tpu_custom_call.1} parent=1 // pred_fallthru
      _
    %v45 = vld [vmem:[%s0] sm:$0xff]
    %v46 = vpack.c.bf16 %v45, %v45
    %v47 = vld [vmem:[%s1] sm:$0xff]
    %v48 = vld [vmem:[%s1 + $0x8] sm:$0xff]
    %v49 = vld [vmem:[%s2] sm:$0x3]
    %v51 = vlaneseq
    %v52 = vshrl.u32 %v51, 7
    %v53 = vsub.s32 0, %v52
    %v54 = vrot.slane %v49, %v53
    %v55 = vlaneseq
    %v56 = vshrl.u32 %v55, 7
    %v57 = vsub.s32 1, %v56
    %v58 = vrot.slane %v49, %v57
    %v63 = vunpack.c.l.b16 %v47
    %v64 = vunpack.c.h.b16 %v47
    %v65 = vunpack.c.l.b16 %v48
    %v66 = vunpack.c.h.b16 %v48
    %v67 = vpack.c.b16 %v65, %v63
    %v68 = vpack.c.b16 %v66, %v64
    %vm71 = vcmask 130048
    %v73 = vsel %vm71, %v46, 0
    %75 = vmatprep.subr.bf16.mxu0 %v68
    %76 = vmatpush1.bf16.msra.mxu0 %v67
    %77 = vmatprep.subr.bf16.mxu0 0
    %78 = vmatpush1.bf16.msra.mxu0 0
    %79 = vmatprep.subr.bf16.mxu0 0
    %80 = vmatpush1.bf16.msra.mxu0 0
    %81 = vmatprep.subr.bf16.mxu0 0
    %82 = vmatpush1.bf16.msra.mxu0 0
    %83 = vmatprep.subr.bf16.mxu0 0
    %84 = vmatpush1.bf16.msra.mxu0 0
    %85 = vmatprep.subr.bf16.mxu0 0
    %86 = vmatpush1.bf16.msra.mxu0 0
    %87 = vmatprep.subr.bf16.mxu0 0
    %88 = vmatpush1.bf16.msra.mxu0 0
    %89 = vmatprep.subr.bf16.mxu0 0
    %90 = vmatpush1.bf16.msra.mxu0 0
    %91 = vmatprep.subr.bf16.mxu0 0
    %92 = vmatpush1.bf16.msra.mxu0 0
    %93 = vmatprep.subr.bf16.mxu0 0
    %94 = vmatpush1.bf16.msra.mxu0 0
    %95 = vmatprep.subr.bf16.mxu0 0
    %96 = vmatpush1.bf16.msra.mxu0 0
    %97 = vmatprep.subr.bf16.mxu0 0
    %98 = vmatpush1.bf16.msra.mxu0 0
    %99 = vmatprep.subr.bf16.mxu0 0
    %100 = vmatpush1.bf16.msra.mxu0 0
    %101 = vmatprep.subr.bf16.mxu0 0
    %102 = vmatpush1.bf16.msra.mxu0 0
    %103 = vmatprep.subr.bf16.mxu0 0
    %104 = vmatpush1.bf16.msra.mxu0 0
    %105 = vmatprep.subr.bf16.mxu0 0
    %106 = vmatpush1.bf16.msra.mxu0 0
    %107 = vmatprep.mubr.bf16.mxu0 0
    %108 = vmatmul.mubr.bf16.gmra.mrb[0].mxu0 %v73
    %v109 = vpop.f32.mrb[0].mxu0
    %v110 = vadd.f32 %v54, %v109
    %v111 = vpop.f32.mrb[0].mxu0
    %v112 = vadd.f32 %v58, %v111
    %v113 = vpop.f32.mrb[0].mxu0
    %v114 = vpop.f32.mrb[0].mxu0
    %115 = vdwg.mxu0
    %v116 = vmax.f32 %v110, 0.0
    %v117 = vmax.f32 %v112, 0.0
    %v118 = vpack.c.bf16 %v116, %v116
    %v119 = vpack.c.bf16 %v117, %v117
    %v120 = vld [vmem:[#allocation2] sm:$0xff]
    %v121 = vld [vmem:[#allocation2 + $0x8] sm:$0xff]
    %v122 = vld [vmem:[#allocation2 + $0x10] sm:$0xff]
    %v123 = vld [vmem:[#allocation2 + $0x18] sm:$0xff]
    %v124 = vld [vmem:[#allocation2 + $0x20] sm:$0xff]
    %v125 = vld [vmem:[#allocation2 + $0x28] sm:$0xff]
    %v126 = vld [vmem:[#allocation2 + $0x30] sm:$0xff]
    %v127 = vld [vmem:[#allocation2 + $0x38] sm:$0xff]
    %v128 = vld [vmem:[#allocation2 + $0x40] sm:$0xff]
    %v129 = vld [vmem:[#allocation2 + $0x48] sm:$0xff]
    %v130 = vld [vmem:[#allocation2 + $0x50] sm:$0xff]
    %v131 = vld [vmem:[#allocation2 + $0x58] sm:$0xff]
    %v132 = vld [vmem:[#allocation2 + $0x60] sm:$0xff]
    %v133 = vld [vmem:[#allocation2 + $0x68] sm:$0xff]
    %v134 = vld [vmem:[#allocation2 + $0x70] sm:$0xff]
    %v135 = vld [vmem:[#allocation2 + $0x78] sm:$0xff]
    %v136 = vld [vmem:[#allocation2 + $0x80] sm:$0xff]
    %v137 = vld [vmem:[#allocation2 + $0x88] sm:$0xff]
    %v138 = vld [vmem:[#allocation2 + $0x90] sm:$0xff]
    %v139 = vld [vmem:[#allocation2 + $0x98] sm:$0xff]
    %v140 = vld [vmem:[#allocation2 + $0xa0] sm:$0xff]
    %v141 = vld [vmem:[#allocation2 + $0xa8] sm:$0xff]
    %v142 = vld [vmem:[#allocation2 + $0xb0] sm:$0xff]
    %v143 = vld [vmem:[#allocation2 + $0xb8] sm:$0xff]
    %v144 = vld [vmem:[#allocation2 + $0xc0] sm:$0xff]
    %v145 = vld [vmem:[#allocation2 + $0xc8] sm:$0xff]
    %v146 = vld [vmem:[#allocation2 + $0xd0] sm:$0xff]
    %v147 = vld [vmem:[#allocation2 + $0xd8] sm:$0xff]
    %v148 = vld [vmem:[#allocation2 + $0xe0] sm:$0xff]
    %v149 = vld [vmem:[#allocation2 + $0xe8] sm:$0xff]
    %v150 = vld [vmem:[#allocation2 + $0xf0] sm:$0xff]
    %v151 = vld [vmem:[#allocation2 + $0xf8] sm:$0xff]
    %v152 = vld [vmem:[%s4] sm:$0x3]
    %v154 = vlaneseq
    %v155 = vshrl.u32 %v154, 7
    %v156 = vsub.s32 0, %v155
    %v157 = vrot.slane %v152, %v156
    %v158 = vlaneseq
    %v159 = vshrl.u32 %v158, 7
    %v160 = vsub.s32 1, %v159
    %v161 = vrot.slane %v152, %v160
    %v196 = vunpack.c.l.b16 %v120
    %v197 = vunpack.c.h.b16 %v120
    %v198 = vunpack.c.l.b16 %v121
    %v199 = vunpack.c.h.b16 %v121
    %v200 = vunpack.c.l.b16 %v122
    %v201 = vunpack.c.h.b16 %v122
    %v202 = vunpack.c.l.b16 %v123
    %v203 = vunpack.c.h.b16 %v123
    %v204 = vunpack.c.l.b16 %v124
    %v205 = vunpack.c.h.b16 %v124
    %v206 = vunpack.c.l.b16 %v125
    %v207 = vunpack.c.h.b16 %v125
    %v208 = vunpack.c.l.b16 %v126
    %v209 = vunpack.c.h.b16 %v126
    %v210 = vunpack.c.l.b16 %v127
    %v211 = vunpack.c.h.b16 %v127
    %v212 = vunpack.c.l.b16 %v128
    %v213 = vunpack.c.h.b16 %v128
    %v214 = vunpack.c.l.b16 %v129
    %v215 = vunpack.c.h.b16 %v129
    %v216 = vunpack.c.l.b16 %v130
    %v217 = vunpack.c.h.b16 %v130
    %v218 = vunpack.c.l.b16 %v131
    %v219 = vunpack.c.h.b16 %v131
    %v220 = vunpack.c.l.b16 %v132
    %v221 = vunpack.c.h.b16 %v132
    %v222 = vunpack.c.l.b16 %v133
    %v223 = vunpack.c.h.b16 %v133
    %v224 = vunpack.c.l.b16 %v134
    %v225 = vunpack.c.h.b16 %v134
    %v226 = vunpack.c.l.b16 %v135
    %v227 = vunpack.c.h.b16 %v135
    %v228 = vunpack.c.l.b16 %v136
    %v229 = vunpack.c.h.b16 %v136
    %v230 = vunpack.c.l.b16 %v137
    %v231 = vunpack.c.h.b16 %v137
    %v232 = vunpack.c.l.b16 %v138
    %v233 = vunpack.c.h.b16 %v138
    %v234 = vunpack.c.l.b16 %v139
    %v235 = vunpack.c.h.b16 %v139
    %v236 = vunpack.c.l.b16 %v140
    %v237 = vunpack.c.h.b16 %v140
    %v238 = vunpack.c.l.b16 %v141
    %v239 = vunpack.c.h.b16 %v141
    %v240 = vunpack.c.l.b16 %v142
    %v241 = vunpack.c.h.b16 %v142
    %v242 = vunpack.c.l.b16 %v143
    %v243 = vunpack.c.h.b16 %v143
    %v244 = vunpack.c.l.b16 %v144
    %v245 = vunpack.c.h.b16 %v144
    %v246 = vunpack.c.l.b16 %v145
    %v247 = vunpack.c.h.b16 %v145
    %v248 = vunpack.c.l.b16 %v146
    %v249 = vunpack.c.h.b16 %v146
    %v250 = vunpack.c.l.b16 %v147
    %v251 = vunpack.c.h.b16 %v147
    %v252 = vunpack.c.l.b16 %v148
    %v253 = vunpack.c.h.b16 %v148
    %v254 = vunpack.c.l.b16 %v149
    %v255 = vunpack.c.h.b16 %v149
    %v256 = vunpack.c.l.b16 %v150
    %v257 = vunpack.c.h.b16 %v150
    %v258 = vunpack.c.l.b16 %v151
    %v259 = vunpack.c.h.b16 %v151
    %v260 = vpack.c.b16 %v198, %v196
    %v261 = vpack.c.b16 %v199, %v197
    %v262 = vpack.c.b16 %v202, %v200
    %v263 = vpack.c.b16 %v203, %v201
    %v264 = vpack.c.b16 %v206, %v204
    %v265 = vpack.c.b16 %v207, %v205
    %v266 = vpack.c.b16 %v210, %v208
    %v267 = vpack.c.b16 %v211, %v209
    %v268 = vpack.c.b16 %v214, %v212
    %v269 = vpack.c.b16 %v215, %v213
    %v270 = vpack.c.b16 %v218, %v216
    %v271 = vpack.c.b16 %v219, %v217
    %v272 = vpack.c.b16 %v222, %v220
    %v273 = vpack.c.b16 %v223, %v221
    %v274 = vpack.c.b16 %v226, %v224
    %v275 = vpack.c.b16 %v227, %v225
    %v276 = vpack.c.b16 %v230, %v228
    %v277 = vpack.c.b16 %v231, %v229
    %v278 = vpack.c.b16 %v234, %v232
    %v279 = vpack.c.b16 %v235, %v233
    %v280 = vpack.c.b16 %v238, %v236
    %v281 = vpack.c.b16 %v239, %v237
    %v282 = vpack.c.b16 %v242, %v240
    %v283 = vpack.c.b16 %v243, %v241
    %v284 = vpack.c.b16 %v246, %v244
    %v285 = vpack.c.b16 %v247, %v245
    %v286 = vpack.c.b16 %v250, %v248
    %v287 = vpack.c.b16 %v251, %v249
    %v288 = vpack.c.b16 %v254, %v252
    %v289 = vpack.c.b16 %v255, %v253
    %v290 = vpack.c.b16 %v258, %v256
    %v291 = vpack.c.b16 %v259, %v257
    %324 = vmatprep.subr.bf16.mxu0 %v261
    %325 = vmatpush1.bf16.msra.mxu0 %v260
    %326 = vmatprep.subr.bf16.mxu0 %v263
    %327 = vmatpush1.bf16.msra.mxu0 %v262
    %328 = vmatprep.subr.bf16.mxu0 %v265
    %329 = vmatpush1.bf16.msra.mxu0 %v264
    %330 = vmatprep.subr.bf16.mxu0 %v267
    %331 = vmatpush1.bf16.msra.mxu0 %v266
    %332 = vmatprep.subr.bf16.mxu0 %v269
    %333 = vmatpush1.bf16.msra.mxu0 %v268
    %334 = vmatprep.subr.bf16.mxu0 %v271
    %335 = vmatpush1.bf16.msra.mxu0 %v270
    %336 = vmatprep.subr.bf16.mxu0 %v273
    %337 = vmatpush1.bf16.msra.mxu0 %v272
    %338 = vmatprep.subr.bf16.mxu0 %v275
    %339 = vmatpush1.bf16.msra.mxu0 %v274
    %340 = vmatprep.subr.bf16.mxu0 %v277
    %341 = vmatpush1.bf16.msra.mxu0 %v276
    %342 = vmatprep.subr.bf16.mxu0 %v279
    %343 = vmatpush1.bf16.msra.mxu0 %v278
    %344 = vmatprep.subr.bf16.mxu0 %v281
    %345 = vmatpush1.bf16.msra.mxu0 %v280
    %346 = vmatprep.subr.bf16.mxu0 %v283
    %347 = vmatpush1.bf16.msra.mxu0 %v282
    %348 = vmatprep.subr.bf16.mxu0 %v285
    %349 = vmatpush1.bf16.msra.mxu0 %v284
    %350 = vmatprep.subr.bf16.mxu0 %v287
    %351 = vmatpush1.bf16.msra.mxu0 %v286
    %352 = vmatprep.subr.bf16.mxu0 %v289
    %353 = vmatpush1.bf16.msra.mxu0 %v288
    %354 = vmatprep.subr.bf16.mxu0 %v291
    %355 = vmatpush1.bf16.msra.mxu0 %v290
    %356 = vmatprep.mubr.bf16.mxu0 %v119
    %357 = vmatmul.mubr.bf16.gmra.mrb[0].mxu0 %v118
    %v358 = vpop.f32.mrb[0].mxu0
    %v359 = vadd.f32 %v157, %v358
    %v360 = vpop.f32.mrb[0].mxu0
    %v361 = vadd.f32 %v161, %v360
    %v362 = vpop.f32.mrb[0].mxu0
    %v363 = vpop.f32.mrb[0].mxu0
    %364 = vdwg.mxu0
    %v365 = vmax.f32 %v359, 0.0
    %v366 = vmax.f32 %v361, 0.0
    %v367 = vpack.c.bf16 %v365, %v365
    %v368 = vpack.c.bf16 %v366, %v366
    %v369 = vld [vmem:[%s5] sm:$0xf]
    %v370 = vld [vmem:[%s5 + $0x4] sm:$0xf]
    %v371 = vld [vmem:[%s5 + $0x8] sm:$0xf]
    %v372 = vld [vmem:[%s5 + $0xc] sm:$0xf]
    %v373 = vld [vmem:[%s5 + $0x10] sm:$0xf]
    %v374 = vld [vmem:[%s5 + $0x14] sm:$0xf]
    %v375 = vld [vmem:[%s5 + $0x18] sm:$0xf]
    %v376 = vld [vmem:[%s5 + $0x1c] sm:$0xf]
    %v377 = vld [vmem:[%s5 + $0x20] sm:$0xf]
    %v378 = vld [vmem:[%s5 + $0x24] sm:$0xf]
    %v379 = vld [vmem:[%s5 + $0x28] sm:$0xf]
    %v380 = vld [vmem:[%s5 + $0x2c] sm:$0xf]
    %v381 = vld [vmem:[%s5 + $0x30] sm:$0xf]
    %v382 = vld [vmem:[%s5 + $0x34] sm:$0xf]
    %v383 = vld [vmem:[%s5 + $0x38] sm:$0xf]
    %v384 = vld [vmem:[%s5 + $0x3c] sm:$0xf]
    %v385 = vld [vmem:[%s5 + $0x40] sm:$0xf]
    %v386 = vld [vmem:[%s5 + $0x44] sm:$0xf]
    %v387 = vld [vmem:[%s5 + $0x48] sm:$0xf]
    %v388 = vld [vmem:[%s5 + $0x4c] sm:$0xf]
    %v389 = vld [vmem:[%s5 + $0x50] sm:$0xf]
    %v390 = vld [vmem:[%s5 + $0x54] sm:$0xf]
    %v391 = vld [vmem:[%s5 + $0x58] sm:$0xf]
    %v392 = vld [vmem:[%s5 + $0x5c] sm:$0xf]
    %v393 = vld [vmem:[%s5 + $0x60] sm:$0xf]
    %v394 = vld [vmem:[%s5 + $0x64] sm:$0xf]
    %v395 = vld [vmem:[%s5 + $0x68] sm:$0xf]
    %v396 = vld [vmem:[%s5 + $0x6c] sm:$0xf]
    %v397 = vld [vmem:[%s5 + $0x70] sm:$0xf]
    %v398 = vld [vmem:[%s5 + $0x74] sm:$0xf]
    %v399 = vld [vmem:[%s5 + $0x78] sm:$0xf]
    %v400 = vld [vmem:[%s5 + $0x7c] sm:$0xf]
    %v401 = vld [vmem:[%s6] sm:$0x1]
    %v403 = vlaneseq
    %v404 = vshrl.u32 %v403, 7
    %v405 = vsub.s32 0, %v404
    %v406 = vrot.slane %v401, %v405
    %v440 = vunpack.c.l.b16 %v369
    %v441 = vunpack.c.l.b16 %v370
    %v442 = vunpack.c.l.b16 %v371
    %v443 = vunpack.c.l.b16 %v372
    %v444 = vunpack.c.l.b16 %v373
    %v445 = vunpack.c.l.b16 %v374
    %v446 = vunpack.c.l.b16 %v375
    %v447 = vunpack.c.l.b16 %v376
    %v448 = vunpack.c.l.b16 %v377
    %v449 = vunpack.c.l.b16 %v378
    %v450 = vunpack.c.l.b16 %v379
    %v451 = vunpack.c.l.b16 %v380
    %v452 = vunpack.c.l.b16 %v381
    %v453 = vunpack.c.l.b16 %v382
    %v454 = vunpack.c.l.b16 %v383
    %v455 = vunpack.c.l.b16 %v384
    %v456 = vunpack.c.l.b16 %v385
    %v457 = vunpack.c.l.b16 %v386
    %v458 = vunpack.c.l.b16 %v387
    %v459 = vunpack.c.l.b16 %v388
    %v460 = vunpack.c.l.b16 %v389
    %v461 = vunpack.c.l.b16 %v390
    %v462 = vunpack.c.l.b16 %v391
    %v463 = vunpack.c.l.b16 %v392
    %v464 = vunpack.c.l.b16 %v393
    %v465 = vunpack.c.l.b16 %v394
    %v466 = vunpack.c.l.b16 %v395
    %v467 = vunpack.c.l.b16 %v396
    %v468 = vunpack.c.l.b16 %v397
    %v469 = vunpack.c.l.b16 %v398
    %v470 = vunpack.c.l.b16 %v399
    %v471 = vunpack.c.l.b16 %v400
    %v472 = vpack.c.b16 %v441, %v440
    %v473 = vpack.c.b16 %v443, %v442
    %v474 = vpack.c.b16 %v445, %v444
    %v475 = vpack.c.b16 %v447, %v446
    %v476 = vpack.c.b16 %v449, %v448
    %v477 = vpack.c.b16 %v451, %v450
    %v478 = vpack.c.b16 %v453, %v452
    %v479 = vpack.c.b16 %v455, %v454
    %v480 = vpack.c.b16 %v457, %v456
    %v481 = vpack.c.b16 %v459, %v458
    %v482 = vpack.c.b16 %v461, %v460
    %v483 = vpack.c.b16 %v463, %v462
    %v484 = vpack.c.b16 %v465, %v464
    %v485 = vpack.c.b16 %v467, %v466
    %v486 = vpack.c.b16 %v469, %v468
    %v487 = vpack.c.b16 %v471, %v470
    %504 = vmatprep.subr.bf16.mxu0 0
    %505 = vmatpush1.bf16.msra.mxu0 %v472
    %506 = vmatprep.subr.bf16.mxu0 0
    %507 = vmatpush1.bf16.msra.mxu0 %v473
    %508 = vmatprep.subr.bf16.mxu0 0
    %509 = vmatpush1.bf16.msra.mxu0 %v474
    %510 = vmatprep.subr.bf16.mxu0 0
    %511 = vmatpush1.bf16.msra.mxu0 %v475
    %512 = vmatprep.subr.bf16.mxu0 0
    %513 = vmatpush1.bf16.msra.mxu0 %v476
    %514 = vmatprep.subr.bf16.mxu0 0
    %515 = vmatpush1.bf16.msra.mxu0 %v477
    %516 = vmatprep.subr.bf16.mxu0 0
    %517 = vmatpush1.bf16.msra.mxu0 %v478
    %518 = vmatprep.subr.bf16.mxu0 0
    %519 = vmatpush1.bf16.msra.mxu0 %v479
    %520 = vmatprep.subr.bf16.mxu0 0
    %521 = vmatpush1.bf16.msra.mxu0 %v480
    %522 = vmatprep.subr.bf16.mxu0 0
    %523 = vmatpush1.bf16.msra.mxu0 %v481
    %524 = vmatprep.subr.bf16.mxu0 0
    %525 = vmatpush1.bf16.msra.mxu0 %v482
    %526 = vmatprep.subr.bf16.mxu0 0
    %527 = vmatpush1.bf16.msra.mxu0 %v483
    %528 = vmatprep.subr.bf16.mxu0 0
    %529 = vmatpush1.bf16.msra.mxu0 %v484
    %530 = vmatprep.subr.bf16.mxu0 0
    %531 = vmatpush1.bf16.msra.mxu0 %v485
    %532 = vmatprep.subr.bf16.mxu0 0
    %533 = vmatpush1.bf16.msra.mxu0 %v486
    %534 = vmatprep.subr.bf16.mxu0 0
    %535 = vmatpush1.bf16.msra.mxu0 %v487
    %536 = vmatprep.mubr.bf16.mxu0 %v368
    %537 = vmatmul.mubr.bf16.gmra.mrb[0].mxu0 %v367
    %v538 = vpop.f32.mrb[0].mxu0
    %v539 = vadd.f32 %v406, %v538
    %v540 = vpop.f32.mrb[0].mxu0
    %v541 = vpop.f32.mrb[0].mxu0
    %v542 = vpop.f32.mrb[0].mxu0
    %543 = vdwg.mxu0
    %v544 = vmax.f32 %v539, -20.0
    %v545 = vmin.f32 %v544, 2.0
    %v546 = vmul.f32 %v545, 1.442695
    %v547 = vpow.pop %v546
    %v548 = vld [vmem:[%s7] sm:$0xff]
    %550 = vrot.lane.b32.xlu0 %v548, 6
    %v551 = vpop.permute.xlu0 %550
    %v553 = vmul.f32 %v547, %v551
    %555 = vrot.lane.b32.xlu0 %v553, 122
    %v556 = vpop.permute.xlu0 %555
    %v558 = vadd.f32 %v539, %v556
    %v559 = vtanh.pop %v558
    %v560 = vmul.f32 %v548, -0.5
    %v561 = vmul.f32 %v560, %v548
    %563 = vrot.lane.b32.xlu0 %v545, 122
    %v564 = vpop.permute.xlu0 %563
    %v566 = vsub.f32 %v561, %v564
    %v567 = vsub.f32 %v566, 0.9189385
    %v568 = vand.u32 2147483647, %v558
    %v569 = vsub.f32 0.6931472, %v568
    %v570 = vmul.f32 %v568, -2.0
    %v571 = vmul.f32 %v570, 1.442695
    %v572 = vpow.pop %v571
    %v573 = vadd.f32 %v572, 1.0
    %v574 = vlog2.pop %v573
    %v575 = vmul.f32 %v574, 0.6931472
    %v576 = vmul.f32 -0.5, %v572
    %v577 = vadd.f32 %v576, 1.0
    %v578 = vmul.f32 %v577, %v572
    %v579 = vand.u32 2147483647, %v572
    %vm580 = vcmp.lt.f32.partialorder %v579, 0.0004427343
    %v581 = vsel %vm580, %v578, %v575
    %v582 = vsub.f32 %v569, %v581
    %v583 = vmul.f32 %v582, 2.0
    %v584 = vsub.f32 %v567, %v583
    %vm585 = vcmask 48128
    %v586 = vsel %vm585, %v584, 0.0
    %587 = vadd.xlane.f32.xlu0 %v586
    %v588 = vpop.xlane.xlu0 %587
    %v589 = vsel %vm585, %v559, %v588
    %vm590 = vcmask 56320
    %v591 = vsel %vm590, %v589, 0.0
    %592 = vst [vmem:[#allocation5] sm:$0xff] %v591
    // Predicated region
    $region38: #{tpu_custom_call.1} parent=1 // pred_check
      _
    $region39: #{tpu_custom_call.1} parent=1 // pred_check_branch
      %594 = sbr.rel (0) target = $region41
    $region40: #{tpu_custom_call.1} parent=1 // pred_region
      %s596 = ssub.s32 128, 128
      %597 = vsyncadd [#allocation4], %s596
      %s599 = sshll.u32 [#allocation5], 4
      %s600 = int_to_ptr.vmem [resolvable:$true] %s599
      %602 = dma.vmem_to_hbm [thread:$0]  %s600, 128, %s8, [#allocation4]
    $region41: #{tpu_custom_call.1} parent=1 // pred_fallthru
      _
    // Predicated region
    $region42: #{tpu_custom_call.1} parent=1 // pred_check
      _
    $region43: #{tpu_custom_call.1} parent=1 // pred_check_branch
      %604 = sbr.rel (0) target = $region45
    $region44: #{tpu_custom_call.1} parent=1 // pred_region
      %605 = dma.done [#allocation4], 128
    $region45: #{tpu_custom_call.1} parent=1 // pred_fallthru
      _
    %606 = vsyncpa [#allocation3], 1
    %607 = vsyncpa [#allocation4], 1

</llo_original>
